<compile_context>
chip_gen: v7x
topology: tpu7x:2x2x1
jax: 0.10.0
libtpu: 0.0.40
codegen_flags: <defaults>
</compile_context>

<pallas_src>
import functools

import jax
import jax.numpy as jnp
import numpy as np
from jax.experimental import pallas as pl
from jax.experimental.pallas import tpu as pltpu

_NEG_BIG = -1e30          # finite "-inf" for non-routable lanes (exp -> 0, never wins top-k)
_MIB = 1024 * 1024


def _round_up(x, m):
    return ((x + m - 1) // m) * m


def _vmem_budget_bytes():
    """Generation-aware per-kernel VMEM budget (~70% of physical leaves Mosaic headroom)."""
    cap = 64 * _MIB                         # conservative fallback == v7x physical VMEM
    try:
        cap = int(pltpu.get_tpu_info().vmem_capacity_bytes)
    except Exception:                       # API drift / non-TPU tracer -> stay conservative
        pass
    return int(cap * 0.70)                  # v7x ~44.8 MiB, v5e/v6e ~89.6 MiB


def _tile_footprint_bytes(tile_s, E, L, x_bytes, w_bytes):
    """Per-tile VMEM footprint, including in-kernel temporaries."""
    return (
        2 * tile_s * E * x_bytes            # x tile, double-buffered
        + 2 * E * L * w_bytes               # resident classifier weight (conservative 2x)
        + 2 * tile_s * tile_s * 2           # resident bf16 triangular matrix (conservative 2x)
        + 2 * 3 * tile_s * L * 4            # three outputs, double-buffered
        + 8 * tile_s * L * 4                # f32 temporaries (logits/e/probs/work/sel/priority/..)
        + L * 4                             # carry scratch
    )


def _pick_tile_s(S, E, L, x_bytes, w_bytes, budget):
    """Largest S-tile <= 256 that fits the budget (cap keeps the O(tile_s^2) cumsum cheap)."""
    s8 = _round_up(max(S, 1), 8)
    for t in (256, 128, 64, 32, 16, 8):
        if t > s8:
            continue
        if _tile_footprint_bytes(t, E, L, x_bytes, w_bytes) <= budget:
            return t
    return 8


def _make_router_kernel(tile_s, L, num_shared, num_routable, top_k, expert_capacity):
    NS, NR = num_shared, num_routable

    def kernel(x_ref, wt_ref, tri_ref, mask_ref, probs_ref, logits_ref, carry_ref):
        # carry_ref: (1, L) f32 — running pre-capacity per-expert token count (per batch row).
        @pl.when(pl.program_id(1) == 0)
        def _():
            carry_ref[...] = jnp.zeros_like(carry_ref)

        x = x_ref[...]                      # (tile_s, E)  f32 or bf16
        wt = wt_ref[...]                    # (E, L)       pre-transposed + lane-padded weight

        # ---- classifier (Linear, no bias) on the MXU, f32 accumulation ----
        logits = jnp.dot(x, wt, preferred_element_type=jnp.float32)     # (tile_s, L)

        col = jax.lax.broadcasted_iota(jnp.int32, (tile_s, L), 1)
        routable = (col >= NS) & (col < NS + NR)
        # Shared + pad lanes must never win softmax mass or top-k selection.
        masked_logits = jnp.where(routable, logits, _NEG_BIG)

        # ---- softmax over routable experts (token-choice). Exact normalization so the
        # stored probabilities are safe for combine weights / aux losses. ----
        m = jnp.max(masked_logits, axis=-1, keepdims=True)
        e = jnp.exp(masked_logits - m)
        denom = jnp.sum(e, axis=-1, keepdims=True)
        probs = e * (1.0 / denom)

        # ---- top-k on (masked) logits: softmax is monotonic, so the selected experts and
        # tie-breaks match selecting on probs, and selection never waits on the divide.
        # Ties resolve to the lowest expert index (torch.topk tie order is not guaranteed
        # on every backend; documented assumption). ----
        work = masked_logits
        sel = jnp.zeros((tile_s, L), jnp.float32)
        for _ in range(top_k):                              # small static int -> unrolled
            mx = jnp.max(work, axis=-1, keepdims=True)
            cand = jnp.where(work == mx, col, L)
            first = jnp.min(cand, axis=-1, keepdims=True)
            onehot = col == first
            sel = sel + onehot.astype(jnp.float32)
            work = jnp.where(onehot, -jnp.inf, work)
        # TODO(synk): for top_k >= 4 on v6e/v7x, fuse value+index into one XLU reduction
        #             per step (bitcast the column index into the low mantissa bits).

        # ---- token priority = carry + in-tile inclusive cumsum along seq (dim=-2):
        # bf16 lower-triangular matmul with f32 accumulation (0/1 values stay exact). ----
        token_priority = carry_ref[...] + jnp.dot(
            tri_ref[...], sel.astype(jnp.bfloat16), preferred_element_type=jnp.float32)
        # Last row of the inclusive cumsum == carry + per-expert in-tile totals
        # (pre-capacity, matching torch.cumsum) — no extra sublane reduction needed.
        carry_ref[...] = token_priority[tile_s - 1:tile_s, :]

        final_mask = jnp.where(token_priority <= float(expert_capacity), sel, 0.0)

        # Shared experts process every token: write the "ones" lanes in-kernel.
        if NS > 0:
            is_shared = col < NS
            final_mask = jnp.where(is_shared, 1.0, final_mask)
            probs = jnp.where(is_shared, 1.0, probs)

        mask_ref[...] = final_mask.astype(jnp.int32)
        probs_ref[...] = probs
        logits_ref[...] = logits            # raw logits; only lanes [NS, NS+NR) are consumed

    return kernel


def topk_router_forward(x, w, *, top_k, expert_capacity, num_shared_experts,
                        tile_s=None, matmul_dtype=jnp.bfloat16):
    """TopKRouter forward (jitter == 0 inference path).

    x: (B, S, E); w: (num_routable, E).  matmul_dtype controls the classifier MXU input
    dtype (bf16 default per perf review; pass jnp.float32 for bit-accurate logits).
    """
    B, S, E = x.shape
    NR = w.shape[0]
    NS = int(num_shared_experts)
    NE = NS + NR
    assert w.shape[1] == E
    assert 1 <= top_k <= NR

    if matmul_dtype is None:
        matmul_dtype = x.dtype
    L = _round_up(NE, 128)      # lane layout: [0,NS) shared | [NS, NS+NR) routable | pad

    # Pre-transpose + lane-pad the classifier weight once (no in-kernel transpose).
    wt = jnp.zeros((E, L), matmul_dtype)
    wt = wt.at[:, NS:NS + NR].set(jnp.transpose(w).astype(matmul_dtype))
    x_in = x.astype(matmul_dtype)

    x_bytes = jnp.dtype(matmul_dtype).itemsize
    budget = _vmem_budget_bytes()
    if tile_s is None:
        tile_s = _pick_tile_s(S, E, L, x_bytes, x_bytes, budget)
    assert tile_s % 8 == 0

    # Non-divisible S: zero-pad the tail. Pad rows follow every real token of the batch
    # row, so real tokens' cumsum / capacity masks are unaffected; pad outputs are sliced.
    S_pad = _round_up(max(S, tile_s), tile_s)
    if S_pad != S:
        x_in = jnp.pad(x_in, ((0, 0), (0, S_pad - S), (0, 0)))
    n_s = S_pad // tile_s

    # Hoisted constant: inclusive lower-triangular cumsum matrix (bf16, exact 0/1).
    tri = jnp.tril(jnp.ones((tile_s, tile_s), jnp.bfloat16))

    kernel = _make_router_kernel(tile_s, L, NS, NR, top_k, expert_capacity)

    out_shape = (
        jax.ShapeDtypeStruct((B, S_pad, L), jnp.int32),
        jax.ShapeDtypeStruct((B, S_pad, L), jnp.float32),
        jax.ShapeDtypeStruct((B, S_pad, L), jnp.float32),
    )

    grid_spec = pltpu.PrefetchScalarGridSpec(
        num_scalar_prefetch=0,
        grid=(B, n_s),
        in_specs=[
            pl.BlockSpec((None, tile_s, E), lambda b, s: (b, s, 0)),   # streamed x tile
            pl.BlockSpec((E, L), lambda b, s: (0, 0)),                 # resident weight
            pl.BlockSpec((tile_s, tile_s), lambda b, s: (0, 0)),       # resident tri
        ],
        out_specs=[
            pl.BlockSpec((None, tile_s, L), lambda b, s: (b, s, 0)),
            pl.BlockSpec((None, tile_s, L), lambda b, s: (b, s, 0)),
            pl.BlockSpec((None, tile_s, L), lambda b, s: (b, s, 0)),
        ],
        scratch_shapes=[pltpu.VMEM((1, L), jnp.float32)],   # per-expert running count carry
    )

    footprint = _tile_footprint_bytes(tile_s, E, L, x_bytes, x_bytes)
    vmem_limit = max(32 * _MIB, min(int(footprint * 1.5), budget))

    cost = pl.CostEstimate(
        flops=2 * B * S_pad * E * L + 2 * B * S_pad * tile_s * L,
        transcendentals=B * S_pad * L,
        bytes_accessed=(B * S_pad * E * x_bytes + E * L * x_bytes
                        + tile_s * tile_s * 2 + 3 * B * S_pad * L * 4),
    )

    mask_p, probs_p, logits_p = pl.pallas_call(
        kernel,
        out_shape=out_shape,
        grid_spec=grid_spec,
        compiler_params=pltpu.CompilerParams(
            dimension_semantics=("parallel", "arbitrary"),
            vmem_limit_bytes=vmem_limit,
        ),
        cost_estimate=cost,
    )(x_in, wt, tri)

    # Glue: drop seq padding and padded expert lanes (shared lanes already in place).
    expert_mask = mask_p[:, :S, :NE]
    router_probs = probs_p[:, :S, :NE]
    router_logits = logits_p[:, :S, NS:NS + NR]
    return expert_mask, router_probs, router_logits


def _reference_forward(x, w, *, top_k, expert_capacity, num_shared_experts):
    """Pure-JAX reference mirroring the PyTorch module semantics."""
    B, S, _ = x.shape
    NR = w.shape[0]
    logits = jnp.einsum("bse,ne->bsn", x, w, precision=jax.lax.Precision.HIGHEST)
    probs = jax.nn.softmax(logits, axis=-1)
    _, idx = jax.lax.top_k(probs, top_k)                          # (B, S, k)
    mask = jax.nn.one_hot(idx, NR, dtype=jnp.int32).sum(axis=-2)  # (B, S, NR)
    priority = jnp.cumsum(mask, axis=-2)
    mask = mask * (priority <= expert_capacity).astype(jnp.int32)
    if num_shared_experts > 0:
        mask = jnp.concatenate(
            [jnp.ones((B, S, num_shared_experts), jnp.int32), mask], axis=-1)
        probs = jnp.concatenate(
            [jnp.ones((B, S, num_shared_experts), probs.dtype), probs], axis=-1)
    return mask, probs, logits


if __name__ == "__main__":
    # ---- small config consistent with the module ----
    batch, seq, embed_dim = 2, 8, 32
    num_experts, num_shared = 8, 2
    num_routable = num_experts - num_shared
    top_k, expert_capacity = 2, 3

    key = jax.random.PRNGKey(0)
    kx, kw, kx2, kw2 = jax.random.split(key, 4)

    x = jax.random.normal(kx, (batch, seq, embed_dim), dtype=jnp.float32)
    bound = 1.0 / np.sqrt(embed_dim)   # nn.Linear default U(-1/sqrt(fan_in), 1/sqrt(fan_in))
    w = jax.random.uniform(kw, (num_routable, embed_dim),
                           minval=-bound, maxval=bound, dtype=jnp.float32)

    fwd = functools.partial(topk_router_forward, top_k=top_k,
                            expert_capacity=expert_capacity,
                            num_shared_experts=num_shared)

    # Exact path (f32 MXU inputs) vs. pure-JAX reference.
    mask_k, probs_k, logits_k = jax.block_until_ready(fwd(x, w, matmul_dtype=jnp.float32))
    mask_r, probs_r, logits_r = _reference_forward(
        x, w, top_k=top_k, expert_capacity=expert_capacity, num_shared_experts=num_shared)
    assert mask_k.shape == (batch, seq, num_experts)
    assert probs_k.shape == (batch, seq, num_experts)
    assert logits_k.shape == (batch, seq, num_routable)
    np.testing.assert_array_equal(np.asarray(mask_k), np.asarray(mask_r))
    np.testing.assert_allclose(np.asarray(logits_k), np.asarray(logits_r),
                               rtol=1e-4, atol=1e-4)
    np.testing.assert_allclose(np.asarray(probs_k), np.asarray(probs_r),
                               rtol=1e-4, atol=1e-4)

    # ---- larger config: multi-tile carry + non-divisible seq (padded tail tile) ----
    B2, S2, E2 = 1, 200, 128
    NE2, NS2 = 16, 2
    NR2 = NE2 - NS2
    top_k2, cap2 = 2, 20
    x2 = jax.random.normal(kx2, (B2, S2, E2), dtype=jnp.float32)
    bound2 = 1.0 / np.sqrt(E2)
    w2 = jax.random.uniform(kw2, (NR2, E2), minval=-bound2, maxval=bound2,
                            dtype=jnp.float32)
    fwd2 = functools.partial(topk_router_forward, top_k=top_k2,
                             expert_capacity=cap2, num_shared_experts=NS2)
    m2, p2, l2 = jax.block_until_ready(fwd2(x2, w2, matmul_dtype=jnp.float32))
    m2r, p2r, l2r = _reference_forward(x2, w2, top_k=top_k2, expert_capacity=cap2,
                                       num_shared_experts=NS2)
    np.testing.assert_array_equal(np.asarray(m2), np.asarray(m2r))
    np.testing.assert_allclose(np.asarray(l2), np.asarray(l2r), rtol=1e-4, atol=1e-4)
    np.testing.assert_allclose(np.asarray(p2), np.asarray(p2r), rtol=1e-4, atol=1e-4)

    # ---- default production path: bf16 MXU inputs (relaxed numerical + structural check) ----
    m_bf, p_bf, l_bf = jax.block_until_ready(fwd2(x2, w2))    # default matmul_dtype=bf16
    np.testing.assert_allclose(np.asarray(l_bf), np.asarray(l2r), rtol=5e-2, atol=5e-2)
    np.testing.assert_allclose(np.asarray(p_bf), np.asarray(p2r), atol=5e-2)
    m_bf_np = np.asarray(m_bf)
    assert set(np.unique(m_bf_np).tolist()).issubset({0, 1})
    assert np.all(m_bf_np[..., :NS2] == 1)                    # shared lanes are all ones
    assert np.all(m_bf_np[..., NS2:].sum(axis=-1) <= top_k2)  # <= top_k routable selections

    print("KERNEL_OK")
</pallas_src>

<mosaic_0001>
module attributes {stable_mosaic.version = 11 : i64} {
  func.func @kernel(%arg0: i32, %arg1: i32, %arg2: memref<1x8x32xf32, #tpu.memory_space<vmem>>, %arg3: memref<32x128xf32, #tpu.memory_space<vmem>>, %arg4: memref<8x8xbf16, #tpu.memory_space<vmem>>, %arg5: memref<1x8x128xi32, #tpu.memory_space<vmem>>, %arg6: memref<1x8x128xf32, #tpu.memory_space<vmem>>, %arg7: memref<1x8x128xf32, #tpu.memory_space<vmem>>, %arg8: memref<1x128xf32, #tpu.memory_space<vmem>>) attributes {dimension_semantics = [#tpu.dimension_semantics<parallel>, #tpu.dimension_semantics<arbitrary>], iteration_bounds = array<i64: 2, 1>, scalar_prefetch = 0 : i64, scratch_operands = 1 : i64, tpu.core_type = #tpu.core_type<tc>, window_params = [{transform_indices = @transform_0, window_bounds = array<i64: 1, 8, 32>}, {pipeline_mode = #tpu.pipeline_mode<synchronous>, transform_indices = @transform_1, window_bounds = array<i64: 32, 128>}, {pipeline_mode = #tpu.pipeline_mode<synchronous>, transform_indices = @transform_2, window_bounds = array<i64: 8, 8>}, {transform_indices = @transform_3, window_bounds = array<i64: 1, 8, 128>}, {transform_indices = @transform_4, window_bounds = array<i64: 1, 8, 128>}, {transform_indices = @transform_5, window_bounds = array<i64: 1, 8, 128>}]} {
    %c0_i32 = arith.constant 0 : i32
    %0 = arith.cmpi eq, %arg1, %c0_i32 : i32
    %1 = arith.extui %0 : i1 to i32
    %c0_i32_0 = arith.constant 0 : i32
    %2 = arith.cmpi ne, %1, %c0_i32_0 : i32
    scf.if %2 {
      %cst_37 = arith.constant 0.000000e+00 : f32
      %83 = vector.broadcast %cst_37 : f32 to vector<1x128xf32>
      %c0_38 = arith.constant 0 : index
      %c0_39 = arith.constant 0 : index
      %84 = vector.load %arg8[%c0_38, %c0_39] : memref<1x128xf32, #tpu.memory_space<vmem>>, vector<1x128xf32>
      tpu.vector_store %arg8[%c0_38, %c0_39], %83 {strides = array<i32>} : memref<1x128xf32, #tpu.memory_space<vmem>>, vector<1x128xf32>,
    } else {
    }
    %c0 = arith.constant 0 : index
    %c0_1 = arith.constant 0 : index
    %c0_2 = arith.constant 0 : index
    %3 = vector.load %arg2[%c0, %c0_1, %c0_2] : memref<1x8x32xf32, #tpu.memory_space<vmem>>, vector<1x8x32xf32>
    %4 = vector.shape_cast %3 : vector<1x8x32xf32> to vector<8x32xf32>
    %c0_3 = arith.constant 0 : index
    %c0_4 = arith.constant 0 : index
    %5 = vector.load %arg3[%c0_3, %c0_4] : memref<32x128xf32, #tpu.memory_space<vmem>>, vector<32x128xf32>
    %cst = arith.constant dense<0.000000e+00> : vector<8x128xf32>
    %6 = tpu.matmul %4, %5, %cst {dimension_numbers = #tpu.dot_dimension_numbers<[1], [0], [0], [1], [0, 0, 1, 1], [], []>} : vector<8x32xf32>, vector<32x128xf32>, vector<8x128xf32> -> vector<8x128xf32>
    %7 = tpu.iota {dimensions = array<i32: 1>} : vector<8x128xi32>
    %c2_i32 = arith.constant 2 : i32
    %8 = vector.broadcast %c2_i32 : i32 to vector<8x128xi32>
    %9 = arith.cmpi sge, %7, %8 : vector<8x128xi32>
    %c8_i32 = arith.constant 8 : i32
    %10 = vector.broadcast %c8_i32 : i32 to vector<8x128xi32>
    %11 = arith.cmpi slt, %7, %10 : vector<8x128xi32>
    %12 = arith.andi %9, %11 : vector<8x128xi1>
    %cst_5 = arith.constant -1.000000e+30 : f32
    %13 = vector.broadcast %cst_5 : f32 to vector<8x128xf32>
    %14 = arith.select %12, %6, %13 : vector<8x128xi1>, vector<8x128xf32>
    %cst_6 = arith.constant dense<0xFF800000> : vector<8xf32>
    %15 = vector.multi_reduction <maximumf>, %14, %cst_6 [1] : vector<8x128xf32> to vector<8xf32>
    %16 = vector.shape_cast %15 : vector<8xf32> to vector<8x1xf32>
    %17 = vector.broadcast %16 : vector<8x1xf32> to vector<8x128xf32>
    %18 = arith.subf %14, %17 : vector<8x128xf32>
    %19 = math.exp %18 : vector<8x128xf32>
    %cst_7 = arith.constant dense<0.000000e+00> : vector<8xf32>
    %20 = vector.multi_reduction <add>, %19, %cst_7 [1] : vector<8x128xf32> to vector<8xf32>
    %21 = vector.shape_cast %20 : vector<8xf32> to vector<8x1xf32>
    %cst_8 = arith.constant 1.000000e+00 : f32
    %22 = vector.broadcast %cst_8 : f32 to vector<8x1xf32>
    %23 = arith.divf %22, %21 : vector<8x1xf32>
    %24 = vector.broadcast %23 : vector<8x1xf32> to vector<8x128xf32>
    %25 = arith.mulf %19, %24 : vector<8x128xf32>
    %cst_9 = arith.constant 0.000000e+00 : f32
    %26 = vector.broadcast %cst_9 : f32 to vector<8x128xf32>
    %cst_10 = arith.constant dense<0xFF800000> : vector<8xf32>
    %27 = vector.multi_reduction <maximumf>, %14, %cst_10 [1] : vector<8x128xf32> to vector<8xf32>
    %28 = vector.shape_cast %27 : vector<8xf32> to vector<8x1xf32>
    %29 = vector.broadcast %28 : vector<8x1xf32> to vector<8x128xf32>
    %30 = arith.cmpf oeq, %14, %29 : vector<8x128xf32>
    %c128_i32 = arith.constant 128 : i32
    %31 = vector.broadcast %c128_i32 : i32 to vector<8x128xi32>
    %32 = arith.select %30, %7, %31 : vector<8x128xi1>, vector<8x128xi32>
    %cst_11 = arith.constant dense<2147483647> : vector<8xi32>
    %33 = vector.multi_reduction <minsi>, %32, %cst_11 [1] : vector<8x128xi32> to vector<8xi32>
    %34 = vector.shape_cast %33 : vector<8xi32> to vector<8x1xi32>
    %35 = vector.broadcast %34 : vector<8x1xi32> to vector<8x128xi32>
    %36 = arith.cmpi eq, %7, %35 : vector<8x128xi32>
    %37 = arith.extui %36 : vector<8x128xi1> to vector<8x128xi32>
    %38 = arith.sitofp %37 : vector<8x128xi32> to vector<8x128xf32>
    %39 = arith.addf %26, %38 : vector<8x128xf32>
    %cst_12 = arith.constant 0xFF800000 : f32
    %40 = vector.broadcast %cst_12 : f32 to vector<8x128xf32>
    %41 = arith.select %36, %40, %14 : vector<8x128xi1>, vector<8x128xf32>
    %cst_13 = arith.constant dense<0xFF800000> : vector<8xf32>
    %42 = vector.multi_reduction <maximumf>, %41, %cst_13 [1] : vector<8x128xf32> to vector<8xf32>
    %43 = vector.shape_cast %42 : vector<8xf32> to vector<8x1xf32>
    %44 = vector.broadcast %43 : vector<8x1xf32> to vector<8x128xf32>
    %45 = arith.cmpf oeq, %41, %44 : vector<8x128xf32>
    %c128_i32_14 = arith.constant 128 : i32
    %46 = vector.broadcast %c128_i32_14 : i32 to vector<8x128xi32>
    %47 = arith.select %45, %7, %46 : vector<8x128xi1>, vector<8x128xi32>
    %cst_15 = arith.constant dense<2147483647> : vector<8xi32>
    %48 = vector.multi_reduction <minsi>, %47, %cst_15 [1] : vector<8x128xi32> to vector<8xi32>
    %49 = vector.shape_cast %48 : vector<8xi32> to vector<8x1xi32>
    %50 = vector.broadcast %49 : vector<8x1xi32> to vector<8x128xi32>
    %51 = arith.cmpi eq, %7, %50 : vector<8x128xi32>
    %52 = arith.extui %51 : vector<8x128xi1> to vector<8x128xi32>
    %53 = arith.sitofp %52 : vector<8x128xi32> to vector<8x128xf32>
    %54 = arith.addf %39, %53 : vector<8x128xf32>
    %c0_16 = arith.constant 0 : index
    %c0_17 = arith.constant 0 : index
    %55 = vector.load %arg8[%c0_16, %c0_17] : memref<1x128xf32, #tpu.memory_space<vmem>>, vector<1x128xf32>
    %c0_18 = arith.constant 0 : index
    %c0_19 = arith.constant 0 : index
    %56 = vector.load %arg4[%c0_18, %c0_19] : memref<8x8xbf16, #tpu.memory_space<vmem>>, vector<8x8xbf16>
    %57 = arith.truncf %54 : vector<8x128xf32> to vector<8x128xbf16>
    %cst_20 = arith.constant dense<0.000000e+00> : vector<8x128xf32>
    %58 = tpu.matmul %56, %57, %cst_20 {dimension_numbers = #tpu.dot_dimension_numbers<[1], [0], [0], [1], [0, 0, 1, 1], [], []>} : vector<8x8xbf16>, vector<8x128xbf16>, vector<8x128xf32> -> vector<8x128xf32>
    %59 = vector.broadcast %55 : vector<1x128xf32> to vector<8x128xf32>
    %60 = arith.addf %59, %58 : vector<8x128xf32>
    %61 = vector.extract_strided_slice %60 {offsets = [7, 0], sizes = [1, 128], strides = [1, 1]} : vector<8x128xf32> to vector<1x128xf32>
    %c0_21 = arith.constant 0 : index
    %c0_22 = arith.constant 0 : index
    %62 = vector.load %arg8[%c0_21, %c0_22] : memref<1x128xf32, #tpu.memory_space<vmem>>, vector<1x128xf32>
    tpu.vector_store %arg8[%c0_21, %c0_22], %61 {strides = array<i32>} : memref<1x128xf32, #tpu.memory_space<vmem>>, vector<1x128xf32>,
    %cst_23 = arith.constant 3.000000e+00 : f32
    %63 = vector.broadcast %cst_23 : f32 to vector<8x128xf32>
    %64 = arith.cmpf ole, %60, %63 : vector<8x128xf32>
    %cst_24 = arith.constant 0.000000e+00 : f32
    %65 = vector.broadcast %cst_24 : f32 to vector<8x128xf32>
    %66 = arith.select %64, %54, %65 : vector<8x128xi1>, vector<8x128xf32>
    %c2_i32_25 = arith.constant 2 : i32
    %67 = vector.broadcast %c2_i32_25 : i32 to vector<8x128xi32>
    %68 = arith.cmpi slt, %7, %67 : vector<8x128xi32>
    %cst_26 = arith.constant 1.000000e+00 : f32
    %69 = vector.broadcast %cst_26 : f32 to vector<8x128xf32>
    %70 = arith.select %68, %69, %66 : vector<8x128xi1>, vector<8x128xf32>
    %cst_27 = arith.constant 1.000000e+00 : f32
    %71 = vector.broadcast %cst_27 : f32 to vector<8x128xf32>
    %72 = arith.select %68, %71, %25 : vector<8x128xi1>, vector<8x128xf32>
    %73 = arith.fptosi %70 : vector<8x128xf32> to vector<8x128xi32>
    %c0_28 = arith.constant 0 : index
    %c0_29 = arith.constant 0 : index
    %c0_30 = arith.constant 0 : index
    %74 = vector.load %arg5[%c0_28, %c0_29, %c0_30] : memref<1x8x128xi32, #tpu.memory_space<vmem>>, vector<1x8x128xi32>
    %75 = vector.shape_cast %74 : vector<1x8x128xi32> to vector<8x128xi32>
    %76 = vector.shape_cast %73 : vector<8x128xi32> to vector<1x8x128xi32>
    tpu.vector_store %arg5[%c0_28, %c0_29, %c0_30], %76 {strides = array<i32>} : memref<1x8x128xi32, #tpu.memory_space<vmem>>, vector<1x8x128xi32>,
    %c0_31 = arith.constant 0 : index
    %c0_32 = arith.constant 0 : index
    %c0_33 = arith.constant 0 : index
    %77 = vector.load %arg6[%c0_31, %c0_32, %c0_33] : memref<1x8x128xf32, #tpu.memory_space<vmem>>, vector<1x8x128xf32>
    %78 = vector.shape_cast %77 : vector<1x8x128xf32> to vector<8x128xf32>
    %79 = vector.shape_cast %72 : vector<8x128xf32> to vector<1x8x128xf32>
    tpu.vector_store %arg6[%c0_31, %c0_32, %c0_33], %79 {strides = array<i32>} : memref<1x8x128xf32, #tpu.memory_space<vmem>>, vector<1x8x128xf32>,
    %c0_34 = arith.constant 0 : index
    %c0_35 = arith.constant 0 : index
    %c0_36 = arith.constant 0 : index
    %80 = vector.load %arg7[%c0_34, %c0_35, %c0_36] : memref<1x8x128xf32, #tpu.memory_space<vmem>>, vector<1x8x128xf32>
    %81 = vector.shape_cast %80 : vector<1x8x128xf32> to vector<8x128xf32>
    %82 = vector.shape_cast %6 : vector<8x128xf32> to vector<1x8x128xf32>
    tpu.vector_store %arg7[%c0_34, %c0_35, %c0_36], %82 {strides = array<i32>} : memref<1x8x128xf32, #tpu.memory_space<vmem>>, vector<1x8x128xf32>,
    return
  }
  func.func @transform_0(%arg0: i32, %arg1: i32) -> (i32, i32, i32) {
    %c0_i32 = arith.constant 0 : i32
    %c0_i32_0 = arith.constant 0 : i32
    return %arg0, %arg1, %c0_i32 : i32, i32, i32
  }
  func.func @transform_1(%arg0: i32, %arg1: i32) -> (i32, i32) {
    %c0_i32 = arith.constant 0 : i32
    %c0_i32_0 = arith.constant 0 : i32
    %c0_i32_1 = arith.constant 0 : i32
    return %c0_i32, %c0_i32_0 : i32, i32
  }
  func.func @transform_2(%arg0: i32, %arg1: i32) -> (i32, i32) {
    %c0_i32 = arith.constant 0 : i32
    %c0_i32_0 = arith.constant 0 : i32
    %c0_i32_1 = arith.constant 0 : i32
    return %c0_i32, %c0_i32_0 : i32, i32
  }
  func.func @transform_3(%arg0: i32, %arg1: i32) -> (i32, i32, i32) {
    %c0_i32 = arith.constant 0 : i32
    %c0_i32_0 = arith.constant 0 : i32
    return %arg0, %arg1, %c0_i32 : i32, i32, i32
  }
  func.func @transform_4(%arg0: i32, %arg1: i32) -> (i32, i32, i32) {
    %c0_i32 = arith.constant 0 : i32
    %c0_i32_0 = arith.constant 0 : i32
    return %arg0, %arg1, %c0_i32 : i32, i32, i32
  }
  func.func @transform_5(%arg0: i32, %arg1: i32) -> (i32, i32, i32) {
    %c0_i32 = arith.constant 0 : i32
    %c0_i32_0 = arith.constant 0 : i32
    return %arg0, %arg1, %c0_i32 : i32, i32, i32
  }
}

</mosaic_0001>

<llo_original>
// kernel: tpu_custom_call.1
$region0: #{tpu_custom_call.1}
  #allocation0 [shape = 'u32[]', space=smem, size = 0x4, offset = 0x4, fixed_abs, tag = 'smem constant byte address 0x4 - core index']
  #allocation1 [shape = 'u32[144,128]{1,0:T(1,128)}', space=vmem, size = 0x12000, scoped, tag = 'internal scratch']
  #allocation2 [shape = 'f32[1,128]{1,0:T(1,128)}', space=vmem, size = 0x200, scoped, tag = 'scratch operand']
  %s0 = inlined_call_operand.hbm [shape: f32[2,8,32], index: 0, kind: input, shape index: {}]
  %s1 = inlined_call_operand.hbm [shape: f32[32,128], index: 1, kind: input, shape index: {}]
  %s2 = inlined_call_operand.vmem [shape: bf16[8,8], index: 2, kind: input, shape index: {}]
  %s3 = inlined_call_operand.hbm [shape: s32[2,8,128], index: 3, kind: output, shape index: {0}]
  %s4 = inlined_call_operand.hbm [shape: f32[2,8,128], index: 4, kind: output, shape index: {1}]
  %s5 = inlined_call_operand.hbm [shape: f32[2,8,128], index: 5, kind: output, shape index: {2}]
  %6 = xla_tuple %s3, %s4, %s5
  %s7 = sld [smem:[#allocation0]]
  $region73: #{tpu_custom_call.1} parent=0
    _
  %s9 = ssub.s32 1, %s7
  %s10 = scalar_select 0, %s9, %s7
  $region1: #{tpu_custom_call.1} parent=0
    #allocation3 [shape = 'u8[8192]{0}', space=vmem, size = 0x2000, scoped, tag = 'input window, operand 0']
    #allocation4 [shape = 's32[2]{0}', space=sflag, size = 0x8, scoped, tag = 'scoped memory for tpu_custom_call.1']
    #allocation5 [shape = 's32[2]{0}', space=sflag, size = 0x8, scoped, tag = 'scoped memory for tpu_custom_call.1']
    #allocation6 [shape = 'u8[16384]{0}', space=vmem, size = 0x4000, scoped, tag = 'input window, operand 1, single buffered']
    #allocation7 [shape = 's32[1]{0}', space=sflag, size = 0x4, scoped, tag = 'scoped memory for tpu_custom_call.1']
    #allocation8 [shape = 'u8[8192]{0}', space=vmem, size = 0x2000, scoped, tag = 'output window, operand 0']
    #allocation9 [shape = 'u8[8192]{0}', space=vmem, size = 0x2000, scoped, tag = 'output window, operand 1']
    #allocation10 [shape = 's32[2]{0}', space=sflag, size = 0x8, scoped, tag = 'scoped memory for tpu_custom_call.1']
    #allocation11 [shape = 'u8[8192]{0}', space=vmem, size = 0x2000, scoped, tag = 'output window, operand 2']
    %11 = vsyncpa [#allocation4], 0
    %s12 = scalar_lea.sflag [#allocation4], 1
    %13 = vsyncpa %s12, 0
    %14 = vsyncpa [#allocation7], 0
    %15 = vsyncpa [#allocation5], 0
    %s16 = scalar_lea.sflag [#allocation5], 1
    %17 = vsyncpa %s16, 0
    %18 = vsyncpa [#allocation10], 0
    %s19 = scalar_lea.sflag [#allocation10], 1
    %20 = vsyncpa %s19, 0
    loop: start=0, step=1, limit=4
    $region2: #{tpu_custom_call.1} parent=1 // loop_pre_header
      _
    $region3: #{tpu_custom_call.1} parent=1 // loop_header
      %s22 = sphi 0, %s26
      %p23 = scmp.ge.s32.totalorder %s22, 4
      %s29 = sphi 0, %s41
      %s30 = sphi 0, %s37
      %s31 = sphi 0, %s29
      %s32 = sphi 0, %s30
      %s33 = sphi 0, %s31
      %s34 = sphi 0, %s32
      %s46 = sphi 0, %s48
      %s49 = sphi 0, %s46
      %s50 = sphi 0, %s49
      %s66 = sphi 0, %s50
      %s70 = sphi 0, %s70
      %s72 = sphi 0, %s70
      %s73 = sphi 0, %s72
      %s87 = sphi 0, %s73
      %s91 = sphi 0, %s91
      %s93 = sphi 0, %s91
      %s94 = sphi 0, %s93
      %s108 = sphi 0, %s94
      %s116 = sphi 0, %s118
      %s119 = sphi 0, %s116
      %s120 = sphi 0, %s119
      %s136 = sphi 0, %s120
      %s144 = sphi 0, %s146
      %s147 = sphi 0, %s144
      %s148 = sphi 0, %s147
      %s164 = sphi 0, %s148
      %s172 = sphi 0, %s174
      %s175 = sphi 0, %s172
      %s176 = sphi 0, %s175
      %s192 = sphi 0, %s176
    $region4: #{tpu_custom_call.1} parent=1 // loop_header_branch
      %25 = sbr.rel (%p23) target = $region8
    $region5: #{tpu_custom_call.1} parent=1 // loop_body
      %s27 = ssub.s32 %s22, 1
      %s28 = ssub.s32 %s22, 2
      %s35 = sadd.s32 1, %s30
      %p36 = scmp.ge.s32.totalorder %s35, 1
      %s37 = scalar_select %p36, 0, %s35
      %s38 = sadd.s32 1, %s29
      %s39 = scalar_select %p36, %s38, %s29
      %p40 = scmp.ge.s32.totalorder %s39, 2
      %s41 = scalar_select %p40, 0, %s39
      %s42 = ssub.s32 %s29, %s41
      %s43 = ssub.s32 %s30, %s37
      %s44 = sor.u32 %s42, %s43
      %p45 = scmp.eq.s32.totalorder %s44, 0
      %s47 = sadd.s32 %s46, 1
      %s48 = scalar_select %p45, %s46, %s47
      %p51 = pneg %p45
      %p52 = scmp.eq.s32.totalorder %s22, 1
      %p53 = por %p51, %p52
      %p54 = scmp.ne.s32.totalorder %s46, %s49
      %p55 = scmp.eq.s32.totalorder %s22, 0
      %p56 = por %p54, %p55
      %p57 = scmp.ne.s32.totalorder %s46, %s49
      %p58 = scmp.eq.s32.totalorder %s27, 1
      %p59 = por %p57, %p58
      %p60 = scmp.ne.s32.totalorder %s49, %s50
      %p61 = scmp.eq.s32.totalorder %s27, 0
      %p62 = por %p60, %p61
      %p63 = scmp.ne.s32.totalorder %s49, %s50
      %p64 = scmp.eq.s32.totalorder %s28, 1
      %p65 = por %p63, %p64
      %p67 = scmp.ne.s32.totalorder %s50, %s66
      %p68 = scmp.eq.s32.totalorder %s28, 0
      %p69 = por %p67, %p68
      %s71 = sadd.s32 %s70, 1
      %p74 = scmp.eq.s32.totalorder %s22, 1
      %p75 = scmp.ne.s32.totalorder %s70, %s72
      %p76 = scmp.eq.s32.totalorder %s22, 0
      %p77 = por %p75, %p76
      %p78 = scmp.ne.s32.totalorder %s70, %s72
      %p79 = scmp.eq.s32.totalorder %s27, 1
      %p80 = por %p78, %p79
      %p81 = scmp.ne.s32.totalorder %s72, %s73
      %p82 = scmp.eq.s32.totalorder %s27, 0
      %p83 = por %p81, %p82
      %p84 = scmp.ne.s32.totalorder %s72, %s73
      %p85 = scmp.eq.s32.totalorder %s28, 1
      %p86 = por %p84, %p85
      %p88 = scmp.ne.s32.totalorder %s73, %s87
      %p89 = scmp.eq.s32.totalorder %s28, 0
      %p90 = por %p88, %p89
      %s92 = sadd.s32 %s91, 1
      %p95 = scmp.eq.s32.totalorder %s22, 1
      %p96 = scmp.ne.s32.totalorder %s91, %s93
      %p97 = scmp.eq.s32.totalorder %s22, 0
      %p98 = por %p96, %p97
      %p99 = scmp.ne.s32.totalorder %s91, %s93
      %p100 = scmp.eq.s32.totalorder %s27, 1
      %p101 = por %p99, %p100
      %p102 = scmp.ne.s32.totalorder %s93, %s94
      %p103 = scmp.eq.s32.totalorder %s27, 0
      %p104 = por %p102, %p103
      %p105 = scmp.ne.s32.totalorder %s93, %s94
      %p106 = scmp.eq.s32.totalorder %s28, 1
      %p107 = por %p105, %p106
      %p109 = scmp.ne.s32.totalorder %s94, %s108
      %p110 = scmp.eq.s32.totalorder %s28, 0
      %p111 = por %p109, %p110
      %s112 = ssub.s32 %s29, %s41
      %s113 = ssub.s32 %s30, %s37
      %s114 = sor.u32 %s112, %s113
      %p115 = scmp.eq.s32.totalorder %s114, 0
      %s117 = sadd.s32 %s116, 1
      %s118 = scalar_select %p115, %s116, %s117
      %p121 = pneg %p115
      %p122 = scmp.eq.s32.totalorder %s22, 1
      %p123 = por %p121, %p122
      %p124 = scmp.ne.s32.totalorder %s116, %s119
      %p125 = scmp.eq.s32.totalorder %s22, 0
      %p126 = por %p124, %p125
      %p127 = scmp.ne.s32.totalorder %s116, %s119
      %p128 = scmp.eq.s32.totalorder %s27, 1
      %p129 = por %p127, %p128
      %p130 = scmp.ne.s32.totalorder %s119, %s120
      %p131 = scmp.eq.s32.totalorder %s27, 0
      %p132 = por %p130, %p131
      %p133 = scmp.ne.s32.totalorder %s119, %s120
      %p134 = scmp.eq.s32.totalorder %s28, 1
      %p135 = por %p133, %p134
      %p137 = scmp.ne.s32.totalorder %s120, %s136
      %p138 = scmp.eq.s32.totalorder %s28, 0
      %p139 = por %p137, %p138
      %s140 = ssub.s32 %s29, %s41
      %s141 = ssub.s32 %s30, %s37
      %s142 = sor.u32 %s140, %s141
      %p143 = scmp.eq.s32.totalorder %s142, 0
      %s145 = sadd.s32 %s144, 1
      %s146 = scalar_select %p143, %s144, %s145
      %p149 = pneg %p143
      %p150 = scmp.eq.s32.totalorder %s22, 1
      %p151 = por %p149, %p150
      %p152 = scmp.ne.s32.totalorder %s144, %s147
      %p153 = scmp.eq.s32.totalorder %s22, 0
      %p154 = por %p152, %p153
      %p155 = scmp.ne.s32.totalorder %s144, %s147
      %p156 = scmp.eq.s32.totalorder %s27, 1
      %p157 = por %p155, %p156
      %p158 = scmp.ne.s32.totalorder %s147, %s148
      %p159 = scmp.eq.s32.totalorder %s27, 0
      %p160 = por %p158, %p159
      %p161 = scmp.ne.s32.totalorder %s147, %s148
      %p162 = scmp.eq.s32.totalorder %s28, 1
      %p163 = por %p161, %p162
      %p165 = scmp.ne.s32.totalorder %s148, %s164
      %p166 = scmp.eq.s32.totalorder %s28, 0
      %p167 = por %p165, %p166
      %s168 = ssub.s32 %s29, %s41
      %s169 = ssub.s32 %s30, %s37
      %s170 = sor.u32 %s168, %s169
      %p171 = scmp.eq.s32.totalorder %s170, 0
      %s173 = sadd.s32 %s172, 1
      %s174 = scalar_select %p171, %s172, %s173
      %p177 = pneg %p171
      %p178 = scmp.eq.s32.totalorder %s22, 1
      %p179 = por %p177, %p178
      %p180 = scmp.ne.s32.totalorder %s172, %s175
      %p181 = scmp.eq.s32.totalorder %s22, 0
      %p182 = por %p180, %p181
      %p183 = scmp.ne.s32.totalorder %s172, %s175
      %p184 = scmp.eq.s32.totalorder %s27, 1
      %p185 = por %p183, %p184
      %p186 = scmp.ne.s32.totalorder %s175, %s176
      %p187 = scmp.eq.s32.totalorder %s27, 0
      %p188 = por %p186, %p187
      %p189 = scmp.ne.s32.totalorder %s175, %s176
      %p190 = scmp.eq.s32.totalorder %s28, 1
      %p191 = por %p189, %p190
      %p193 = scmp.ne.s32.totalorder %s176, %s192
      %p194 = scmp.eq.s32.totalorder %s28, 0
      %p195 = por %p193, %p194
      %p196 = scmp.le.s32.totalorder 1, %s22
      %p197 = scmp.lt.s32.totalorder %s22, 3
      %p198 = pnand %p196, %p197
      %p199 = pneg %p198
      // Predicated region
      $region9: #{tpu_custom_call.1} parent=5 // pred_check
        _
      $region10: #{tpu_custom_call.1} parent=5 // pred_check_branch
        %201 = sbr.rel (%p198) target = $region12
      $region11: #{tpu_custom_call.1} parent=5 // pred_region
        %s202 = ssub.s32 %s22, 1
        // Predicated region
        $region13: #{tpu_custom_call.1} parent=11 // pred_check
          %p203 = pneg %p83
        $region14: #{tpu_custom_call.1} parent=11 // pred_check_branch
          %205 = sbr.rel (%p203) target = $region16
        $region15: #{tpu_custom_call.1} parent=11 // pred_region
          %s207 = ssub.s32 512, 512
          %208 = vsyncadd [#allocation7], %s207
          %s209 = sshll.u32 [#allocation6], 4
          %s210 = int_to_ptr.vmem [resolvable:$true] %s209
          %215 = dma.hbm_to_vmem [thread:$0]  %s1, 512, %s210, [#allocation7], 128, 128, 8
        $region16: #{tpu_custom_call.1} parent=11 // pred_fallthru
          _
        // Predicated region
        $region17: #{tpu_custom_call.1} parent=11 // pred_check
          %p216 = pneg %p104
        $region18: #{tpu_custom_call.1} parent=11 // pred_check_branch
          %218 = sbr.rel (%p216) target = $region20
        $region19: #{tpu_custom_call.1} parent=11 // pred_region
          _
        $region20: #{tpu_custom_call.1} parent=11 // pred_fallthru
          _
      $region12: #{tpu_custom_call.1} parent=5 // pred_fallthru
        _
      %p219 = scmp.lt.s32.totalorder %s22, 2
      // Predicated region
      $region21: #{tpu_custom_call.1} parent=5 // pred_check
        %p220 = pneg %p219
      $region22: #{tpu_custom_call.1} parent=5 // pred_check_branch
        %222 = sbr.rel (%p220) target = $region24
      $region23: #{tpu_custom_call.1} parent=5 // pred_region
        // Predicated region
        $region25: #{tpu_custom_call.1} parent=23 // pred_check
          %p223 = pneg %p56
        $region26: #{tpu_custom_call.1} parent=23 // pred_check_branch
          %225 = sbr.rel (%p223) target = $region28
        $region27: #{tpu_custom_call.1} parent=23 // pred_region
          %s226 = sand.u32 %s46, 1
          %s227 = scalar_lea.sflag [#allocation4], %s226
          %s228 = sand.u32 %s46, 1
          %s229 = smul.addr %s228, 8
          %s230 = scalar_lea.vmem [#allocation3], %s229
          %s232 = ssub.s32 128, 128
          %233 = vsyncadd %s227, %s232
          %s234 = sadd.s32 %s30, %s29
          %s235 = smul.addr %s234, 128
          %s236 = scalar_lea.hbm %s0, %s235
          %s238 = sshll.u32 %s230, 4
          %s239 = int_to_ptr.vmem [resolvable:$true] %s238
          %241 = dma.hbm_to_vmem [thread:$0]  %s236, 128, %s239, %s227
        $region28: #{tpu_custom_call.1} parent=23 // pred_fallthru
          _
      $region24: #{tpu_custom_call.1} parent=5 // pred_fallthru
        _
      %p242 = scmp.le.s32.totalorder 1, %s22
      %p243 = scmp.lt.s32.totalorder %s22, 3
      %p244 = pnand %p242, %p243
      %p245 = pneg %p244
      // Predicated region
      $region29: #{tpu_custom_call.1} parent=5 // pred_check
        _
      $region30: #{tpu_custom_call.1} parent=5 // pred_check_branch
        %247 = sbr.rel (%p244) target = $region32
      $region31: #{tpu_custom_call.1} parent=5 // pred_region
        %s248 = ssub.s32 %s22, 1
        %s249 = sand.u32 %s49, 1
        %s250 = scalar_lea.sflag [#allocation4], %s249
        %s251 = sand.u32 %s49, 1
        %s252 = smul.addr %s251, 8
        %s253 = scalar_lea.vmem [#allocation3], %s252
        // Predicated region
        $region33: #{tpu_custom_call.1} parent=31 // pred_check
          %p254 = pneg %p62
        $region34: #{tpu_custom_call.1} parent=31 // pred_check_branch
          %256 = sbr.rel (%p254) target = $region36
        $region35: #{tpu_custom_call.1} parent=31 // pred_region
          %257 = dma.done %s250, 128
        $region36: #{tpu_custom_call.1} parent=31 // pred_fallthru
          _
        // Predicated region
        $region37: #{tpu_custom_call.1} parent=31 // pred_check
          %p258 = pneg %p83
        $region38: #{tpu_custom_call.1} parent=31 // pred_check_branch
          %260 = sbr.rel (%p258) target = $region40
        $region39: #{tpu_custom_call.1} parent=31 // pred_region
          %261 = dma.done [#allocation7], 512
        $region40: #{tpu_custom_call.1} parent=31 // pred_fallthru
          _
        %s262 = sand.u32 %s49, 1
        %s263 = scalar_lea.sflag [#allocation4], %s262
        %s264 = sand.u32 %s49, 1
        %s265 = smul.addr %s264, 8
        %s266 = scalar_lea.vmem [#allocation3], %s265
        %p267 = pneg %p62
        %p268 = pneg %p59
        %p269 = pneg %p83
        %p270 = pneg %p80
        %p271 = pneg %p104
        %p272 = pneg %p101
        %p273 = pneg %p132
        %p274 = pneg %p129
        %s275 = sand.u32 %s119, 1
        %s276 = scalar_lea.sflag [#allocation5], %s275
        %s277 = sand.u32 %s119, 1
        %s278 = smul.addr %s277, 8
        %s279 = scalar_lea.vmem [#allocation8], %s278
        %p280 = pneg %p160
        %p281 = pneg %p157
        %s282 = sand.u32 %s27, 1
        %s283 = scalar_lea.sflag [#allocation10], %s282
        %s284 = sand.u32 %s147, 1
        %s285 = smul.addr %s284, 8
        %s286 = scalar_lea.vmem [#allocation9], %s285
        %p287 = pneg %p188
        %p288 = pneg %p185
        %s289 = sand.u32 %s27, 1
        %s290 = scalar_lea.sflag [#allocation10], %s289
        %s291 = sand.u32 %s175, 1
        %s292 = smul.addr %s291, 8
        %s293 = scalar_lea.vmem [#allocation11], %s292
        %p295 = scmp.eq.s32.totalorder %s32, 0
        // Predicated region
        $region41: #{tpu_custom_call.1} parent=31 // pred_check
          %p296 = pneg %p295
        $region42: #{tpu_custom_call.1} parent=31 // pred_check_branch
          %298 = sbr.rel (%p296) target = $region44
        $region43: #{tpu_custom_call.1} parent=31 // pred_region
          %299 = vst [vmem:[#allocation2] sm:$0x1] 0.0
        $region44: #{tpu_custom_call.1} parent=31 // pred_fallthru
          _
        %v300 = vld [vmem:[%s253] sm:$0xff]
        %v301 = vld [vmem:[#allocation6] sm:$0xff]
        %v302 = vld [vmem:[#allocation6 + $0x8] sm:$0xff]
        %v303 = vld [vmem:[#allocation6 + $0x10] sm:$0xff]
        %v304 = vld [vmem:[#allocation6 + $0x18] sm:$0xff]
        %vm305 = vcmask 261120
        %v307 = vsel %vm305, %v300, 0
        %309 = vmatprep.subr.mxu0 0.0
        %310 = vmatpush1.msra.mxu0 %v301
        %311 = vmatprep.subr.mxu0 0.0
        %312 = vmatpush1.msra.mxu0 %v302
        %313 = vmatprep.subr.mxu0 0.0
        %314 = vmatpush1.msra.mxu0 %v303
        %315 = vmatprep.subr.mxu0 0.0
        %316 = vmatpush1.msra.mxu0 %v304
        %317 = vmatprep.subr.mxu0 0.0
        %318 = vmatpush1.msra.mxu0 0.0
        %319 = vmatprep.subr.mxu0 0.0
        %320 = vmatpush1.msra.mxu0 0.0
        %321 = vmatprep.subr.mxu0 0.0
        %322 = vmatpush1.msra.mxu0 0.0
        %323 = vmatprep.subr.mxu0 0.0
        %324 = vmatpush1.msra.mxu0 0.0
        %325 = vmatprep.subr.mxu0 0.0
        %326 = vmatpush1.msra.mxu0 0.0
        %327 = vmatprep.subr.mxu0 0.0
        %328 = vmatpush1.msra.mxu0 0.0
        %329 = vmatprep.subr.mxu0 0.0
        %330 = vmatpush1.msra.mxu0 0.0
        %331 = vmatprep.subr.mxu0 0.0
        %332 = vmatpush1.msra.mxu0 0.0
        %333 = vmatprep.subr.mxu0 0.0
        %334 = vmatpush1.msra.mxu0 0.0
        %335 = vmatprep.subr.mxu0 0.0
        %336 = vmatpush1.msra.mxu0 0.0
        %337 = vmatprep.subr.mxu0 0.0
        %338 = vmatpush1.msra.mxu0 0.0
        %339 = vmatprep.subr.mxu0 0.0
        %340 = vmatpush1.msra.mxu0 0.0
        %341 = vmatprep.subr.mxu0 0.0
        %342 = vmatpush1.msra.mxu0 0.0
        %343 = vmatprep.subr.mxu0 0.0
        %344 = vmatpush1.msra.mxu0 0.0
        %345 = vmatprep.subr.mxu0 0.0
        %346 = vmatpush1.msra.mxu0 0.0
        %347 = vmatprep.subr.mxu0 0.0
        %348 = vmatpush1.msra.mxu0 0.0
        %349 = vmatprep.subr.mxu0 0.0
        %350 = vmatpush1.msra.mxu0 0.0
        %351 = vmatprep.subr.mxu0 0.0
        %352 = vmatpush1.msra.mxu0 0.0
        %353 = vmatprep.subr.mxu0 0.0
        %354 = vmatpush1.msra.mxu0 0.0
        %355 = vmatprep.subr.mxu0 0.0
        %356 = vmatpush1.msra.mxu0 0.0
        %357 = vmatprep.subr.mxu0 0.0
        %358 = vmatpush1.msra.mxu0 0.0
        %359 = vmatprep.subr.mxu0 0.0
        %360 = vmatpush1.msra.mxu0 0.0
        %361 = vmatprep.subr.mxu0 0.0
        %362 = vmatpush1.msra.mxu0 0.0
        %363 = vmatprep.subr.mxu0 0.0
        %364 = vmatpush1.msra.mxu0 0.0
        %365 = vmatprep.subr.mxu0 0.0
        %366 = vmatpush1.msra.mxu0 0.0
        %367 = vmatprep.subr.mxu0 0.0
        %368 = vmatpush1.msra.mxu0 0.0
        %369 = vmatprep.subr.mxu0 0.0
        %370 = vmatpush1.msra.mxu0 0.0
        %371 = vmatprep.subr.mxu0 0.0
        %372 = vmatpush1.msra.mxu0 0.0
        %373 = vmatprep.mubr.f32.mxu0 0.0
        %374 = vmatmul.mubr.f32.gmra.mrb[0].mxu0 %v307
        %v375 = vpop.f32.mrb[0].mxu0
        %v376 = vadd.f32 0.0, %v375
        %v377 = vpop.f32.mrb[0].mxu0
        %378 = vdwg.mxu0
        %v379 = vlaneseq
        %v380 = vand.u32 %v379, 127
        %vm381 = vcmp.ge.s32.totalorder %v380, 2
        %vm382 = vcmp.lt.s32.totalorder %v380, 8
        %vm383 = vmand %vm381, %vm382
        %v384 = vsel %vm383, %v376, -1e+30
        %385 = vmax.xlane.f32.xlu0 %v384
        %v386 = vpop.xlane.xlu0 %385
        %v387 = vsub.f32 %v384, %v386
        %v388 = vmul.f32 %v387, 1.442695
        %v389 = vpow.pop %v388
        %390 = vadd.xlane.f32.xlu0 %v389
        %v391 = vpop.xlane.xlu0 %390
        %v392 = vrcp.pop %v391
        %v393 = vmul.f32 1.0, %v392
        %v394 = vmul.f32 %v389, %v393
        %vm395 = vcmp.eq.f32.partialorder %v384, %v386
        %v396 = vsel %vm395, %v380, 128
        %v397 = vand.u32 %v396, 65535
        %v398 = vshra.s32 %v396, 16
        %v399 = vcvt.s32.f32 %v397
        %v400 = vcvt.s32.f32 %v398
        %401 = vmin.xlane.f32.xlu0 %v400
        %v402 = vpop.xlane.xlu0 %401
        %vm403 = vcmp.eq.f32.partialorder %v400, %v402
        %v404 = vsel %vm403, %v399, inf
        %405 = vmin.xlane.f32.xlu0 %v404
        %v406 = vpop.xlane.xlu0 %405
        %v407 = vcvt.f32.s32 %v406
        %v408 = vcvt.f32.s32 %v402
        %v409 = vshll.u32 %v408, 16
        %v410 = vadd.s32 %v409, %v407
        %vm411 = vcmp.eq.s32.totalorder %v380, %v410
        %v412 = vsel %vm411, 1, 0
        %v413 = vcvt.s32.f32 %v412
        %v414 = vadd.f32 %v413, 0.0
        %v415 = vsel %vm411, -inf, %v384
        %416 = vmax.xlane.f32.xlu0 %v415
        %v417 = vpop.xlane.xlu0 %416
        %vm418 = vcmp.eq.f32.partialorder %v415, %v417
        %v419 = vsel %vm418, %v380, 128
        %v420 = vand.u32 %v419, 65535
        %v421 = vshra.s32 %v419, 16
        %v422 = vcvt.s32.f32 %v420
        %v423 = vcvt.s32.f32 %v421
        %424 = vmin.xlane.f32.xlu0 %v423
        %v425 = vpop.xlane.xlu0 %424
        %vm426 = vcmp.eq.f32.partialorder %v423, %v425
        %v427 = vsel %vm426, %v422, inf
        %428 = vmin.xlane.f32.xlu0 %v427
        %v429 = vpop.xlane.xlu0 %428
        %v430 = vcvt.f32.s32 %v429
        %v431 = vcvt.f32.s32 %v425
        %v432 = vshll.u32 %v431, 16
        %v433 = vadd.s32 %v432, %v430
        %vm434 = vcmp.eq.s32.totalorder %v380, %v433
        %v435 = vsel %vm434, 1, 0
        %v436 = vcvt.s32.f32 %v435
        %v437 = vadd.f32 %v414, %v436
        %v438 = vld [vmem:[#allocation2] sm:$0x1]
        %v439 = vld [vmem:[%s2] sm:$0xf]
        %v440 = vpack.c.bf16 %v437, %v437
        %vm441 = vcmask 64512
        %v443 = vsel %vm441, %v439, 0
        %vm445 = vcmask 1043456
        %v447 = vsel %vm445, %v440, 0
        %449 = vmatprep.subr.bf16.mxu0 0
        %450 = vmatpush1.bf16.msra.mxu0 %v447
        %451 = vmatprep.subr.bf16.mxu0 0
        %452 = vmatpush1.bf16.msra.mxu0 0
        %453 = vmatprep.subr.bf16.mxu0 0
        %454 = vmatpush1.bf16.msra.mxu0 0
        %455 = vmatprep.subr.bf16.mxu0 0
        %456 = vmatpush1.bf16.msra.mxu0 0
        %457 = vmatprep.subr.bf16.mxu0 0
        %458 = vmatpush1.bf16.msra.mxu0 0
        %459 = vmatprep.subr.bf16.mxu0 0
        %460 = vmatpush1.bf16.msra.mxu0 0
        %461 = vmatprep.subr.bf16.mxu0 0
        %462 = vmatpush1.bf16.msra.mxu0 0
        %463 = vmatprep.subr.bf16.mxu0 0
        %464 = vmatpush1.bf16.msra.mxu0 0
        %465 = vmatprep.subr.bf16.mxu0 0
        %466 = vmatpush1.bf16.msra.mxu0 0
        %467 = vmatprep.subr.bf16.mxu0 0
        %468 = vmatpush1.bf16.msra.mxu0 0
        %469 = vmatprep.subr.bf16.mxu0 0
        %470 = vmatpush1.bf16.msra.mxu0 0
        %471 = vmatprep.subr.bf16.mxu0 0
        %472 = vmatpush1.bf16.msra.mxu0 0
        %473 = vmatprep.subr.bf16.mxu0 0
        %474 = vmatpush1.bf16.msra.mxu0 0
        %475 = vmatprep.subr.bf16.mxu0 0
        %476 = vmatpush1.bf16.msra.mxu0 0
        %477 = vmatprep.subr.bf16.mxu0 0
        %478 = vmatpush1.bf16.msra.mxu0 0
        %479 = vmatprep.subr.bf16.mxu0 0
        %480 = vmatpush1.bf16.msra.mxu0 0
        %481 = vmatprep.mubr.bf16.mxu0 0
        %482 = vmatmul.mubr.bf16.gmra.mrb[0].mxu0 %v443
        %v483 = vpop.f32.mrb[0].mxu0
        %v484 = vadd.f32 0.0, %v483
        %v485 = vpop.f32.mrb[0].mxu0
        %v486 = vpop.f32.mrb[0].mxu0
        %v487 = vpop.f32.mrb[0].mxu0
        %488 = vdwg.mxu0
        %v490 = vlaneseq
        %v491 = vshrl.u32 %v490, 7
        %v492 = vsub.s32 0, %v491
        %v493 = vrot.slane %v438, %v492
        %v495 = vadd.f32 %v493, %v484
        %496 = vst [vmem:[#allocation2 - $0x7] sm:$0x80] %v495
        %vm497 = vcmp.le.f32.partialorder %v495, 3.0
        %v498 = vsel %vm497, %v437, 0.0
        %vm499 = vcmp.lt.s32.totalorder %v380, 2
        %v500 = vsel %vm499, 1.0, %v498
        %v501 = vsel %vm499, 1.0, %v394
        %v502 = vcvt.f32.s32.to.zero.pseudo %v500
        %503 = vst [vmem:[%s279] sm:$0xff] %v502
        %504 = vst [vmem:[%s286] sm:$0xff] %v501
        %505 = vst [vmem:[%s293] sm:$0xff] %v376
        %s506 = sand.u32 %s119, 1
        %s507 = scalar_lea.sflag [#allocation5], %s506
        %s508 = sand.u32 %s119, 1
        %s509 = smul.addr %s508, 8
        %s510 = scalar_lea.vmem [#allocation8], %s509
        %s511 = sand.u32 %s27, 1
        %s512 = scalar_lea.sflag [#allocation10], %s511
        %s513 = sand.u32 %s147, 1
        %s514 = smul.addr %s513, 8
        %s515 = scalar_lea.vmem [#allocation9], %s514
        %s516 = sand.u32 %s27, 1
        %s517 = scalar_lea.sflag [#allocation10], %s516
        %s518 = sand.u32 %s175, 1
        %s519 = smul.addr %s518, 8
        %s520 = scalar_lea.vmem [#allocation11], %s519
        // Predicated region
        $region45: #{tpu_custom_call.1} parent=31 // pred_check
          %p521 = pneg %p129
        $region46: #{tpu_custom_call.1} parent=31 // pred_check_branch
          %523 = sbr.rel (%p521) target = $region48
        $region47: #{tpu_custom_call.1} parent=31 // pred_region
          %s525 = ssub.s32 128, 128
          %526 = vsyncadd %s507, %s525
          %s527 = sadd.s32 %s32, %s31
          %s528 = smul.addr %s527, 128
          %s529 = scalar_lea.hbm %s3, %s528
          %s531 = sshll.u32 %s510, 4
          %s532 = int_to_ptr.vmem [resolvable:$true] %s531
          %534 = dma.vmem_to_hbm [thread:$0]  %s532, 128, %s529, %s507
        $region48: #{tpu_custom_call.1} parent=31 // pred_fallthru
          _
        // Predicated region
        $region49: #{tpu_custom_call.1} parent=31 // pred_check
          %p535 = pneg %p157
        $region50: #{tpu_custom_call.1} parent=31 // pred_check_branch
          %537 = sbr.rel (%p535) target = $region52
        $region51: #{tpu_custom_call.1} parent=31 // pred_region
          %s539 = ssub.s32 128, 128
          %540 = vsyncadd %s512, %s539
          %s541 = sadd.s32 %s32, %s31
          %s542 = smul.addr %s541, 128
          %s543 = scalar_lea.hbm %s4, %s542
          %s545 = sshll.u32 %s515, 4
          %s546 = int_to_ptr.vmem [resolvable:$true] %s545
          %548 = dma.vmem_to_hbm [thread:$0]  %s546, 128, %s543, %s512
        $region52: #{tpu_custom_call.1} parent=31 // pred_fallthru
          _
        // Predicated region
        $region53: #{tpu_custom_call.1} parent=31 // pred_check
          %p549 = pneg %p185
        $region54: #{tpu_custom_call.1} parent=31 // pred_check_branch
          %551 = sbr.rel (%p549) target = $region56
        $region55: #{tpu_custom_call.1} parent=31 // pred_region
          %s553 = ssub.s32 128, 128
          %554 = vsyncadd %s517, %s553
          %s555 = sadd.s32 %s32, %s31
          %s556 = smul.addr %s555, 128
          %s557 = scalar_lea.hbm %s5, %s556
          %s559 = sshll.u32 %s520, 4
          %s560 = int_to_ptr.vmem [resolvable:$true] %s559
          %562 = dma.vmem_to_hbm [thread:$0]  %s560, 128, %s557, %s517
        $region56: #{tpu_custom_call.1} parent=31 // pred_fallthru
          _
      $region32: #{tpu_custom_call.1} parent=5 // pred_fallthru
        _
      %p563 = scmp.le.s32.totalorder 2, %s22
      // Predicated region
      $region57: #{tpu_custom_call.1} parent=5 // pred_check
        %p564 = pneg %p563
      $region58: #{tpu_custom_call.1} parent=5 // pred_check_branch
        %566 = sbr.rel (%p564) target = $region60
      $region59: #{tpu_custom_call.1} parent=5 // pred_region
        %s567 = ssub.s32 %s22, 2
        // Predicated region
        $region61: #{tpu_custom_call.1} parent=59 // pred_check
          %p568 = pneg %p135
        $region62: #{tpu_custom_call.1} parent=59 // pred_check_branch
          %570 = sbr.rel (%p568) target = $region64
        $region63: #{tpu_custom_call.1} parent=59 // pred_region
          %s571 = sand.u32 %s120, 1
          %s572 = scalar_lea.sflag [#allocation5], %s571
          %s573 = sand.u32 %s120, 1
          %s574 = smul.addr %s573, 8
          %s575 = scalar_lea.vmem [#allocation8], %s574
          %576 = dma.done %s572, 128
        $region64: #{tpu_custom_call.1} parent=59 // pred_fallthru
          _
        // Predicated region
        $region65: #{tpu_custom_call.1} parent=59 // pred_check
          %p577 = pneg %p163
        $region66: #{tpu_custom_call.1} parent=59 // pred_check_branch
          %579 = sbr.rel (%p577) target = $region68
        $region67: #{tpu_custom_call.1} parent=59 // pred_region
          %s580 = sand.u32 %s28, 1
          %s581 = scalar_lea.sflag [#allocation10], %s580
          %s582 = sand.u32 %s148, 1
          %s583 = smul.addr %s582, 8
          %s584 = scalar_lea.vmem [#allocation9], %s583
          %585 = dma.done %s581, 128
        $region68: #{tpu_custom_call.1} parent=59 // pred_fallthru
          _
        // Predicated region
        $region69: #{tpu_custom_call.1} parent=59 // pred_check
          %p586 = pneg %p191
        $region70: #{tpu_custom_call.1} parent=59 // pred_check_branch
          %588 = sbr.rel (%p586) target = $region72
        $region71: #{tpu_custom_call.1} parent=59 // pred_region
          %s589 = sand.u32 %s28, 1
          %s590 = scalar_lea.sflag [#allocation10], %s589
          %s591 = sand.u32 %s176, 1
          %s592 = smul.addr %s591, 8
          %s593 = scalar_lea.vmem [#allocation11], %s592
          %594 = dma.done %s590, 128
        $region72: #{tpu_custom_call.1} parent=59 // pred_fallthru
          _
      $region60: #{tpu_custom_call.1} parent=5 // pred_fallthru
        _
    $region6: #{tpu_custom_call.1} parent=1 // loop_footer
      %s26 = sadd.s32 1, %s22
    $region7: #{tpu_custom_call.1} parent=1 // loop_footer_branch
      %21 = sbr.rel target = $region3
    $region8: #{tpu_custom_call.1} parent=1 // loop_exit
      _
    %595 = vsyncpa [#allocation4], 1
    %s596 = scalar_lea.sflag [#allocation4], 1
    %597 = vsyncpa %s596, 1
    %598 = vsyncpa [#allocation7], 1
    %599 = vsyncpa [#allocation5], 1
    %s600 = scalar_lea.sflag [#allocation5], 1
    %601 = vsyncpa %s600, 1
    %602 = vsyncpa [#allocation10], 1
    %s603 = scalar_lea.sflag [#allocation10], 1
    %604 = vsyncpa %s603, 1

</llo_original>
